<compile_context>
chip_gen: v7x
topology: tpu7x:2x2x1
jax: 0.10.0
libtpu: 0.0.40
codegen_flags: <defaults>
</compile_context>

<pallas_src>
import functools
import math

import jax
import jax.numpy as jnp
from jax import lax
from jax.experimental import pallas as pl
from jax.experimental.pallas import tpu as pltpu


def _round_up(x: int, m: int) -> int:
    return ((x + m - 1) // m) * m


def _cdiv(a: int, b: int) -> int:
    return -(-a // b)


def _exclusivity_kernel(a_ref, b_ref, o_ref, *, inv_bsz, n_rows, tile_rows,
                        row_block_stride, mask_tail):
    # grid = (parallel split [cols or row-groups], row_tile [reduction])
    p = pl.program_id(0)
    r = pl.program_id(1)

    @pl.when(r == 0)
    def _():
        o_ref[...] = jnp.zeros_like(o_ref)

    # a_ref / b_ref are (T, L_chunk) tiles; cast in-kernel so bf16 inputs are
    # DMA'd at half the bytes while accumulation stays in f32 on the VPU.
    prod = jnp.abs(a_ref[...].astype(jnp.float32) * b_ref[...].astype(jnp.float32))

    if mask_tail:
        # Tail masking (replaces padding in HBM): zero out logical rows >= N.
        # Uses a select (jnp.where) so garbage/NaN bits in the out-of-bounds
        # part of a partial block cannot propagate.
        row0 = (p * row_block_stride + r) * tile_rows
        row_ids = row0 + lax.broadcasted_iota(jnp.int32, (tile_rows, 1), 0)
        prod = jnp.where(row_ids < n_rows, prod, 0.0)

    o_ref[...] += jnp.sum(prod, axis=0, keepdims=True)

    @pl.when(r == pl.num_programs(1) - 1)
    def _():
        o_ref[...] = o_ref[...] * inv_bsz


def exclusivity(attention1: jax.Array, attention2: jax.Array) -> jax.Array:
    """Pallas implementation of Exclusivity.forward for NCHW inputs."""
    assert attention1.shape == attention2.shape
    B, C, H, W = attention1.shape
    N = B * C
    HW = H * W
    dtype_bytes = jnp.dtype(attention1.dtype).itemsize

    # ---- chip-dependent knobs (tile-size target + explicit VMEM limit) ----
    try:
        kind = jax.devices()[0].device_kind.lower()
    except Exception:  # pragma: no cover
        kind = ""
    is_v7 = ("v7" in kind) or ("7x" in kind)           # 2 TensorCores / chip
    if is_v7:
        target_bytes, vmem_limit = 8 << 20, 48 << 20   # 64 MiB physical VMEM/TC
    elif "v6" in kind:
        target_bytes, vmem_limit = 8 << 20, 64 << 20   # 128 MiB physical
    elif "v5" in kind:
        target_bytes, vmem_limit = 4 << 20, 64 << 20   # 16 MiB default scoped!
    else:
        target_bytes, vmem_limit = 4 << 20, 48 << 20

    # ---- flatten; lane-densify when HW is not a multiple of 128 ----
    a = attention1.reshape(N, HW)
    b = attention2.reshape(N, HW)
    k_fold = 1
    if HW % 128 != 0:
        k = 128 // math.gcd(HW, 128)
        if k > 1 and N % k == 0:
            k_fold = k
    N2 = N // k_fold
    L = HW * k_fold
    if k_fold > 1:
        a = a.reshape(N2, L)
        b = b.reshape(N2, L)

    # Sub-32-bit dtypes pack along sublanes; keep row tiles at native packing.
    sub = 8 if dtype_bytes >= 4 else 32

    # Pathologically small inputs: pad rows up to one sublane group (zeros
    # contribute exactly 0; cost is negligible at this size).
    if N2 < sub:
        pad = sub - N2
        a = jnp.pad(a, ((0, pad), (0, 0)))
        b = jnp.pad(b, ((0, pad), (0, 0)))
        N2 = sub

    # ---- parallel split: only on v7x (2 TCs); single-TC chips keep 1 ----
    n_col = 2 if (is_v7 and L % 256 == 0) else 1
    chunk_L = L // n_col

    # ---- row-tile size: ~target_bytes per input tile, multiple of `sub` ----
    rows = (target_bytes // max(1, chunk_L * dtype_bytes)) // sub * sub
    rows = max(sub, rows)
    T = min(rows, (N2 // sub) * sub)      # T <= N2, multiple of sub
    total_blocks = _cdiv(N2, T)

    # v7x fallback when the lane split is unavailable: split the reduction
    # rows across the two cores (each gets its own (1, L) partial-sum block).
    row_split = is_v7 and n_col == 1 and (L % 128 == 0) and total_blocks >= 2

    if row_split:
        R = _cdiv(total_blocks, 2)
        grid = (2, R)
        row_block_stride = R
        coverage = 2 * R * T
        if total_blocks % 2 == 0:
            in_spec = pl.BlockSpec((T, L), lambda p, r: (p * R + r, 0))
        else:
            last_blk = total_blocks - 1
            in_spec = pl.BlockSpec(
                (T, L), lambda p, r: (jnp.minimum(p * R + r, last_blk), 0))
        out_spec = pl.BlockSpec((1, L), lambda p, r: (0, p))
        out_width = 2 * L                 # two partial sums side by side
    else:
        R = total_blocks
        grid = (n_col, R)
        row_block_stride = 0
        coverage = R * T
        in_spec = pl.BlockSpec((T, chunk_L), lambda p, r: (r, p))
        out_spec = pl.BlockSpec((1, chunk_L), lambda p, r: (0, p))
        out_width = L

    mask_tail = coverage > N2

    kernel = functools.partial(
        _exclusivity_kernel,
        inv_bsz=1.0 / float(B),
        n_rows=N2,
        tile_rows=T,
        row_block_stride=row_block_stride,
        mask_tail=mask_tail,
    )

    cost = pl.CostEstimate(
        flops=3 * N * HW,                                   # mul + abs + add
        transcendentals=0,
        bytes_accessed=2 * N * HW * dtype_bytes + out_width * 4,
    )

    out = pl.pallas_call(
        kernel,
        out_shape=jax.ShapeDtypeStruct((1, out_width), jnp.float32),
        grid_spec=pltpu.PrefetchScalarGridSpec(
            num_scalar_prefetch=0,
            grid=grid,
            in_specs=[in_spec, in_spec],
            out_specs=out_spec,
        ),
        compiler_params=pltpu.CompilerParams(
            dimension_semantics=("parallel", "arbitrary"),
            vmem_limit_bytes=vmem_limit,
        ),
        cost_estimate=cost,
    )(a, b)

    # Fold away the (tiny) partial-sum / lane-densification axes and reshape.
    out = out.reshape(-1, HW).sum(axis=0)
    return out.reshape(H, W)


def exclusivity_ref(a, b):
    bsz = a.shape[0]
    mask = jnp.abs(a * b)
    mask = mask.sum(axis=1)
    mask = mask.sum(axis=0)
    return mask / bsz


if __name__ == "__main__":
    key = jax.random.PRNGKey(0)

    def _check(B, C, H, W, k):
        k1, k2 = jax.random.split(k)
        a1 = jax.random.normal(k1, (B, C, H, W), dtype=jnp.float32)
        a2 = jax.random.normal(k2, (B, C, H, W), dtype=jnp.float32)
        out = jax.block_until_ready(exclusivity(a1, a2))
        ref = exclusivity_ref(a1, a2)
        assert out.shape == (H, W), (out.shape, (H, W))
        assert jnp.allclose(out, ref, atol=1e-5, rtol=1e-5), (
            "mismatch vs reference", (B, C, H, W))

    k0, k1, k2 = jax.random.split(key, 3)
    _check(2, 4, 16, 16, k0)   # primary shape: HW=256 lane-dense, N=8
    _check(3, 5, 16, 16, k1)   # N=15: exercises the in-kernel tail mask
    _check(2, 32, 8, 8, k2)    # HW=64: exercises lane-densification (k_fold=2)

    print("KERNEL_OK")
</pallas_src>

<mosaic_0001>
module attributes {stable_mosaic.version = 11 : i64} {
  func.func @_exclusivity_kernel(%arg0: i32, %arg1: i32, %arg2: memref<8x256xf32, #tpu.memory_space<vmem>>, %arg3: memref<8x256xf32, #tpu.memory_space<vmem>>, %arg4: memref<1x256xf32, #tpu.memory_space<vmem>>) attributes {dimension_semantics = [#tpu.dimension_semantics<parallel>, #tpu.dimension_semantics<arbitrary>], iteration_bounds = array<i64: 1, 1>, scalar_prefetch = 0 : i64, scratch_operands = 0 : i64, tpu.core_type = #tpu.core_type<tc>, window_params = [{transform_indices = @transform_0, window_bounds = array<i64: 8, 256>}, {transform_indices = @transform_1, window_bounds = array<i64: 8, 256>}, {transform_indices = @transform_2, window_bounds = array<i64: 1, 256>}]} {
    %c0_i32 = arith.constant 0 : i32
    %0 = arith.cmpi eq, %arg1, %c0_i32 : i32
    %1 = arith.extui %0 : i1 to i32
    %c0_i32_0 = arith.constant 0 : i32
    %2 = arith.cmpi ne, %1, %c0_i32_0 : i32
    scf.if %2 {
      %cst_10 = arith.constant 0.000000e+00 : f32
      %15 = vector.broadcast %cst_10 : f32 to vector<1x256xf32>
      %c0_11 = arith.constant 0 : index
      %c0_12 = arith.constant 0 : index
      %16 = vector.load %arg4[%c0_11, %c0_12] : memref<1x256xf32, #tpu.memory_space<vmem>>, vector<1x256xf32>
      tpu.vector_store %arg4[%c0_11, %c0_12], %15 {strides = array<i32>} : memref<1x256xf32, #tpu.memory_space<vmem>>, vector<1x256xf32>,
    } else {
    }
    %c0 = arith.constant 0 : index
    %c0_1 = arith.constant 0 : index
    %3 = vector.load %arg2[%c0, %c0_1] : memref<8x256xf32, #tpu.memory_space<vmem>>, vector<8x256xf32>
    %c0_2 = arith.constant 0 : index
    %c0_3 = arith.constant 0 : index
    %4 = vector.load %arg3[%c0_2, %c0_3] : memref<8x256xf32, #tpu.memory_space<vmem>>, vector<8x256xf32>
    %5 = arith.mulf %3, %4 : vector<8x256xf32>
    %6 = math.absf %5 : vector<8x256xf32>
    %c0_4 = arith.constant 0 : index
    %c0_5 = arith.constant 0 : index
    %7 = vector.load %arg4[%c0_4, %c0_5] : memref<1x256xf32, #tpu.memory_space<vmem>>, vector<1x256xf32>
    %cst = arith.constant dense<0.000000e+00> : vector<256xf32>
    %8 = vector.multi_reduction <add>, %6, %cst [0] : vector<8x256xf32> to vector<256xf32>
    %9 = vector.shape_cast %8 : vector<256xf32> to vector<1x256xf32>
    %10 = arith.addf %7, %9 : vector<1x256xf32>
    %c0_6 = arith.constant 0 : index
    %c0_7 = arith.constant 0 : index
    %11 = vector.load %arg4[%c0_6, %c0_7] : memref<1x256xf32, #tpu.memory_space<vmem>>, vector<1x256xf32>
    tpu.vector_store %arg4[%c0_6, %c0_7], %10 {strides = array<i32>} : memref<1x256xf32, #tpu.memory_space<vmem>>, vector<1x256xf32>,
    %c0_i32_8 = arith.constant 0 : i32
    %12 = arith.cmpi eq, %arg1, %c0_i32_8 : i32
    %13 = arith.extui %12 : i1 to i32
    %c0_i32_9 = arith.constant 0 : i32
    %14 = arith.cmpi ne, %13, %c0_i32_9 : i32
    scf.if %14 {
      %c0_10 = arith.constant 0 : index
      %c0_11 = arith.constant 0 : index
      %15 = vector.load %arg4[%c0_10, %c0_11] : memref<1x256xf32, #tpu.memory_space<vmem>>, vector<1x256xf32>
      %cst_12 = arith.constant 5.000000e-01 : f32
      %16 = vector.broadcast %cst_12 : f32 to vector<1x256xf32>
      %17 = arith.mulf %15, %16 : vector<1x256xf32>
      %c0_13 = arith.constant 0 : index
      %c0_14 = arith.constant 0 : index
      %18 = vector.load %arg4[%c0_13, %c0_14] : memref<1x256xf32, #tpu.memory_space<vmem>>, vector<1x256xf32>
      tpu.vector_store %arg4[%c0_13, %c0_14], %17 {strides = array<i32>} : memref<1x256xf32, #tpu.memory_space<vmem>>, vector<1x256xf32>,
    } else {
    }
    return
  }
  func.func @transform_0(%arg0: i32, %arg1: i32) -> (i32, i32) {
    %c0_i32 = arith.constant 0 : i32
    return %arg1, %arg0 : i32, i32
  }
  func.func @transform_1(%arg0: i32, %arg1: i32) -> (i32, i32) {
    %c0_i32 = arith.constant 0 : i32
    return %arg1, %arg0 : i32, i32
  }
  func.func @transform_2(%arg0: i32, %arg1: i32) -> (i32, i32) {
    %c0_i32 = arith.constant 0 : i32
    %c0_i32_0 = arith.constant 0 : i32
    return %c0_i32, %arg0 : i32, i32
  }
}

</mosaic_0001>

<llo_original>
// kernel: tpu_custom_call.1
$region0: #{tpu_custom_call.1}
  #allocation0 [shape = 'u32[]', space=smem, size = 0x4, offset = 0x4, fixed_abs, tag = 'smem constant byte address 0x4 - core index']
  #allocation1 [shape = 'u32[144,128]{1,0:T(1,128)}', space=vmem, size = 0x12000, scoped, tag = 'internal scratch']
  %s0 = inlined_call_operand.hbm [shape: f32[8,256], index: 0, kind: input, shape index: {}]
  %s1 = inlined_call_operand.hbm [shape: f32[8,256], index: 1, kind: input, shape index: {}]
  %s2 = inlined_call_operand.hbm [shape: f32[1,256], index: 2, kind: output, shape index: {}]
  %s3 = sld [smem:[#allocation0]]
  $region34: #{tpu_custom_call.1} parent=0
    _
  %s5 = ssub.s32 1, %s3
  %s6 = scalar_select 0, %s5, %s3
  $region1: #{tpu_custom_call.1} parent=0
    #allocation2 [shape = 'u8[8192]{0}', space=vmem, size = 0x2000, scoped, tag = 'input window, operand 0, single buffered']
    #allocation3 [shape = 's32[1]{0}', space=sflag, size = 0x4, scoped, tag = 'scoped memory for tpu_custom_call.1']
    #allocation4 [shape = 's32[1]{0}', space=sflag, size = 0x4, scoped, tag = 'scoped memory for tpu_custom_call.1']
    #allocation5 [shape = 'u8[8192]{0}', space=vmem, size = 0x2000, scoped, tag = 'input window, operand 1, single buffered']
    #allocation6 [shape = 's32[1]{0}', space=sflag, size = 0x4, scoped, tag = 'scoped memory for tpu_custom_call.1']
    #allocation7 [shape = 'u8[1024]{0}', space=vmem, size = 0x400, scoped, tag = 'output window, operand 0, single buffered']
    %7 = vsyncpa [#allocation3], 0
    %8 = vsyncpa [#allocation6], 0
    %9 = vsyncpa [#allocation4], 0
    // Predicated region
    $region2: #{tpu_custom_call.1} parent=1 // pred_check
      _
    $region3: #{tpu_custom_call.1} parent=1 // pred_check_branch
      %11 = sbr.rel (0) target = $region5
    $region4: #{tpu_custom_call.1} parent=1 // pred_region
      %s13 = ssub.s32 256, 256
      %14 = vsyncadd [#allocation3], %s13
      %s16 = sshll.u32 [#allocation2], 4
      %s17 = int_to_ptr.vmem [resolvable:$true] %s16
      %19 = dma.hbm_to_vmem [thread:$0]  %s0, 256, %s17, [#allocation3]
    $region5: #{tpu_custom_call.1} parent=1 // pred_fallthru
      _
    // Predicated region
    $region6: #{tpu_custom_call.1} parent=1 // pred_check
      _
    $region7: #{tpu_custom_call.1} parent=1 // pred_check_branch
      %21 = sbr.rel (0) target = $region9
    $region8: #{tpu_custom_call.1} parent=1 // pred_region
      %s23 = ssub.s32 256, 256
      %24 = vsyncadd [#allocation6], %s23
      %s26 = sshll.u32 [#allocation5], 4
      %s27 = int_to_ptr.vmem [resolvable:$true] %s26
      %29 = dma.hbm_to_vmem [thread:$0]  %s1, 256, %s27, [#allocation6]
    $region9: #{tpu_custom_call.1} parent=1 // pred_fallthru
      _
    // Predicated region
    $region10: #{tpu_custom_call.1} parent=1 // pred_check
      _
    $region11: #{tpu_custom_call.1} parent=1 // pred_check_branch
      %31 = sbr.rel (0) target = $region13
    $region12: #{tpu_custom_call.1} parent=1 // pred_region
      %32 = dma.done [#allocation3], 256
    $region13: #{tpu_custom_call.1} parent=1 // pred_fallthru
      _
    // Predicated region
    $region14: #{tpu_custom_call.1} parent=1 // pred_check
      _
    $region15: #{tpu_custom_call.1} parent=1 // pred_check_branch
      %34 = sbr.rel (0) target = $region17
    $region16: #{tpu_custom_call.1} parent=1 // pred_region
      %35 = dma.done [#allocation6], 256
    $region17: #{tpu_custom_call.1} parent=1 // pred_fallthru
      _
    %p36 = scmp.eq.s32.totalorder 0, 0
    // Predicated region
    $region18: #{tpu_custom_call.1} parent=1 // pred_check
      %p37 = pneg %p36
    $region19: #{tpu_custom_call.1} parent=1 // pred_check_branch
      %39 = sbr.rel (%p37) target = $region21
    $region20: #{tpu_custom_call.1} parent=1 // pred_region
      %v40 = vlaneseq
      %vm41 = vcmp.ge.s32.totalorder %v40, 0
      %vm42 = vcmp.lt.s32.totalorder %v40, 256
      %vm43 = vmand %vm41, %vm42
      %44 = vst.msk [vmem:[#allocation7] sm:$0x3] %vm43, 0.0
    $region21: #{tpu_custom_call.1} parent=1 // pred_fallthru
      _
    %v45 = vld [vmem:[#allocation2] sm:$0xff]
    %v46 = vld [vmem:[#allocation2 + $0x8] sm:$0xff]
    %v47 = vld [vmem:[#allocation5] sm:$0xff]
    %v48 = vld [vmem:[#allocation5 + $0x8] sm:$0xff]
    %v49 = vmul.f32 %v45, %v47
    %v50 = vmul.f32 %v46, %v48
    %v51 = vand.u32 2147483647, %v49
    %v52 = vand.u32 2147483647, %v50
    %v53 = vld [vmem:[#allocation7] sm:$0x3]
    %v54 = vrot.slane %v51, 4
    %v55 = vadd.f32 %v51, %v54
    %v56 = vrot.slane %v55, 2
    %v57 = vadd.f32 %v55, %v56
    %v58 = vrot.slane %v57, 1
    %v59 = vadd.f32 %v57, %v58
    %v60 = vrot.slane %v52, 4
    %v61 = vadd.f32 %v52, %v60
    %v62 = vrot.slane %v61, 2
    %v63 = vadd.f32 %v61, %v62
    %v64 = vrot.slane %v63, 1
    %v65 = vadd.f32 %v63, %v64
    %v68 = vcombine.low %v59, %v65
    %v70 = vunpack.c.l.s4 1966171168
    %v71 = vunpack.c.0.s8 %v70
    %v72 = vlaneseq
    %v73 = vshrl.u32 %v72, 7
    %v74 = vsub.s32 %v71, %v73
    %v75 = vrot.slane %v68, %v74
    %v77 = vunpack.c.l.s4 1966171168
    %v78 = vunpack.c.0.s8 %v77
    %v79 = vlaneseq
    %v80 = vshrl.u32 %v79, 7
    %v81 = vsub.s32 %v78, %v80
    %v82 = vrot.slane %v75, %v81
    %v84 = vadd.f32 %v53, %v82
    %v85 = vlaneseq
    %vm86 = vcmp.ge.s32.totalorder %v85, 0
    %vm87 = vcmp.lt.s32.totalorder %v85, 256
    %vm88 = vmand %vm86, %vm87
    %89 = vst.msk [vmem:[#allocation7] sm:$0x3] %vm88, %v84
    // Predicated region
    $region22: #{tpu_custom_call.1} parent=1 // pred_check
      %p90 = pneg %p36
    $region23: #{tpu_custom_call.1} parent=1 // pred_check_branch
      %92 = sbr.rel (%p90) target = $region25
    $region24: #{tpu_custom_call.1} parent=1 // pred_region
      %v93 = vld [vmem:[#allocation7] sm:$0x3]
      %v94 = vmul.f32 %v93, 0.5
      %95 = vst.msk [vmem:[#allocation7] sm:$0x3] %vm88, %v94
    $region25: #{tpu_custom_call.1} parent=1 // pred_fallthru
      _
    // Predicated region
    $region26: #{tpu_custom_call.1} parent=1 // pred_check
      _
    $region27: #{tpu_custom_call.1} parent=1 // pred_check_branch
      %97 = sbr.rel (0) target = $region29
    $region28: #{tpu_custom_call.1} parent=1 // pred_region
      %s99 = ssub.s32 32, 32
      %100 = vsyncadd [#allocation4], %s99
      %s102 = sshll.u32 [#allocation7], 4
      %s103 = int_to_ptr.vmem [resolvable:$true] %s102
      %105 = dma.vmem_to_hbm [thread:$0]  %s103, 32, %s2, [#allocation4]
    $region29: #{tpu_custom_call.1} parent=1 // pred_fallthru
      _
    // Predicated region
    $region30: #{tpu_custom_call.1} parent=1 // pred_check
      _
    $region31: #{tpu_custom_call.1} parent=1 // pred_check_branch
      %107 = sbr.rel (0) target = $region33
    $region32: #{tpu_custom_call.1} parent=1 // pred_region
      %108 = dma.done [#allocation4], 32
    $region33: #{tpu_custom_call.1} parent=1 // pred_fallthru
      _
    %109 = vsyncpa [#allocation3], 1
    %110 = vsyncpa [#allocation6], 1
    %111 = vsyncpa [#allocation4], 1

</llo_original>
